<compile_context>
chip_gen: v7x
topology: tpu7x:2x2x1
jax: 0.10.0
libtpu: 0.0.40
codegen_flags: <defaults>
</compile_context>

<pallas_src>
import functools
import math

import jax
import jax.numpy as jnp
from jax.experimental import pallas as pl
from jax.experimental.pallas import tpu as pltpu


def _round_up(x, m):
    return (x + m - 1) // m * m


def _vmem_cap_bytes():
    """Per-generation scoped-VMEM cap: ~75% of physical VMEM when queryable
    (96 MiB on v5e/v6e's 128 MiB, 48 MiB on v7x's 64 MiB); 48 MiB fallback."""
    try:
        info = pltpu.get_tpu_info()
        phys = getattr(info, "vmem_capacity_bytes", None)
        if phys:
            return int(phys) * 3 // 4
    except Exception:
        pass
    return 48 * 2**20


def _classifier_body(x_ref, w1_ref, b1_ref, w2_ref, b2_ref, o_ref, mask_ref):
    """Fused Linear -> ReLU -> (Dropout) -> Linear -> Softmax for one batch tile."""
    x = x_ref[...]                      # (TB, D), compute dtype (bf16 by default)
    b1 = b1_ref[...]                    # (1, H) f32, read once per tile
    b2 = b2_ref[...]                    # (1, Y) f32

    # First dense layer on the MXU, f32 accumulation.
    h = jnp.dot(x, w1_ref[...], preferred_element_type=jnp.float32) + b1
    h = jnp.maximum(h, 0.0)             # ReLU

    # Dropout(p=0.5): pre-scaled inverted-dropout mask {0, 2} streamed per tile.
    if mask_ref is not None:
        h = h * mask_ref[...].astype(jnp.float32)

    # Logits layer (cast the activation back to the streaming dtype so the
    # second matmul also takes the bf16 MXU path).
    logits = jnp.dot(h.astype(w2_ref.dtype), w2_ref[...],
                     preferred_element_type=jnp.float32) + b2

    # Numerically stable softmax over dim=1 (class axis == last axis).
    m = jnp.max(logits, axis=-1, keepdims=True)
    e = jnp.exp(logits - m)
    denom = jnp.sum(e, axis=-1, keepdims=True)
    # approx=False keeps row sums within ~1e-6 of 1.0 (module semantics).
    o_ref[...] = (e * pl.reciprocal(denom, approx=False)).astype(o_ref.dtype)

    # TODO(synk): with Y=8 the (TB, Y) output store is lane-sparse (8/128 lanes);
    # the suggested (TB//16, 128) lane-dense repack needs a cross-lane in-kernel
    # reshape whose Mosaic lowering is not guaranteed, so it is omitted here.


def _make_kernel(training: bool):
    if training:
        def kernel(x_ref, w1_ref, b1_ref, w2_ref, b2_ref, mask_ref, o_ref):
            _classifier_body(x_ref, w1_ref, b1_ref, w2_ref, b2_ref, o_ref, mask_ref)
    else:
        def kernel(x_ref, w1_ref, b1_ref, w2_ref, b2_ref, o_ref):
            _classifier_body(x_ref, w1_ref, b1_ref, w2_ref, b2_ref, o_ref, None)
    return kernel


def classifier_forward(x, params, *, training=False, dropout_mask=None,
                       dropout_rng=None, tb_max=4096,
                       compute_dtype=jnp.bfloat16):
    """Fused Classifier forward pass as a batch-tiled Pallas kernel.

    x:            (B, input_dim) array (f32 or bf16; streamed as `compute_dtype`)
    params:       (w1 (D,H), b1 (H,), w2 (H,Y), b2 (Y,))
    training:     apply Dropout(0.5) (inverted, pre-scaled) when True.
    dropout_mask: optional (B, H) pre-scaled keep-mask {0, 2}; if None it is
                  drawn from `dropout_rng` (vary the key per training step).
    """
    w1, b1, w2, b2 = params
    B, D = x.shape
    H = w1.shape[1]
    Y = w2.shape[1]
    assert w1.shape == (D, H) and w2.shape == (H, Y)
    assert b1.shape == (H,) and b2.shape == (Y,)

    # ---- batch tile selection ---------------------------------------------
    # Big tiles amortize the ~0.35us per-grid-step overhead; keep >=2 tiles
    # when the batch allows so the "parallel" axis can split across TCs.
    B8 = _round_up(B, 8)
    TB = min(tb_max, B8)
    if B8 // TB < 2 and B8 >= 16:
        TB = _round_up((B8 + 1) // 2, 8)

    # ---- VMEM budget (generation-aware cap, never pinned at 64 MiB) --------
    cap = _vmem_cap_bytes()
    cbytes = jnp.dtype(compute_dtype).itemsize

    def _vmem_est(tb):
        lane = lambda n: max(_round_up(n, 128), 128)
        return ((D * lane(H) + H * lane(Y)) * cbytes            # resident weights
                + (lane(H) + lane(Y)) * 4                       # resident f32 biases
                + 2 * tb * lane(D) * cbytes                     # 2x-buffered x tiles
                + 2 * tb * lane(Y) * 4                          # 2x-buffered out tiles
                + (2 * tb * lane(H) * cbytes if training else 0)  # mask tiles
                + 4 * tb * lane(H) * 4)                         # h / softmax temps

    while TB > 8 and 2 * _vmem_est(TB) > cap:
        TB = max(8, _round_up(TB // 2, 8))

    vmem_limit = int(min(max(2 * _vmem_est(TB), 32 * 2**20), cap))

    B_pad = _round_up(B, TB)
    n_tiles = B_pad // TB

    # ---- operands -----------------------------------------------------------
    xc = x.astype(compute_dtype)
    if B_pad != B:
        # Zero-padded rows still produce finite (bias-driven) softmax rows;
        # they are sliced off below and never become NaN.
        xc = jnp.pad(xc, ((0, B_pad - B), (0, 0)))

    w1c = w1.astype(compute_dtype)
    w2c = w2.astype(compute_dtype)
    b1r = b1.reshape(1, H).astype(jnp.float32)
    b2r = b2.reshape(1, Y).astype(jnp.float32)

    operands = [xc, w1c, b1r, w2c, b2r]
    in_specs = [
        pl.BlockSpec((TB, D), lambda i: (i, 0)),    # x tile (pipelined, double-buffered)
        pl.BlockSpec((D, H), lambda i: (0, 0)),     # w1 resident in VMEM
        pl.BlockSpec((1, H), lambda i: (0, 0)),     # b1 resident
        pl.BlockSpec((H, Y), lambda i: (0, 0)),     # w2 resident
        pl.BlockSpec((1, Y), lambda i: (0, 0)),     # b2 resident
    ]

    if training:
        if dropout_mask is None:
            if dropout_rng is None:
                raise ValueError("training=True requires dropout_rng or dropout_mask")
            # TODO(synk): this random stream will not bit-match torch's dropout RNG.
            keep = jax.random.bernoulli(dropout_rng, 0.5, (B, H))
            dropout_mask = (keep * 2.0).astype(compute_dtype)   # inverted dropout scale 1/(1-p)
        mask = dropout_mask.astype(compute_dtype)
        assert mask.shape == (B, H)
        if B_pad != B:
            mask = jnp.pad(mask, ((0, B_pad - B), (0, 0)))
        operands.append(mask)
        in_specs.append(pl.BlockSpec((TB, H), lambda i: (i, 0)))

    grid_spec = pltpu.PrefetchScalarGridSpec(
        num_scalar_prefetch=0,
        grid=(n_tiles,),
        in_specs=in_specs,
        out_specs=pl.BlockSpec((TB, Y), lambda i: (i, 0)),
    )

    out = pl.pallas_call(
        _make_kernel(training),
        out_shape=jax.ShapeDtypeStruct((B_pad, Y), jnp.float32),
        grid_spec=grid_spec,
        compiler_params=pltpu.CompilerParams(
            dimension_semantics=("parallel",),   # batch tiles are independent
            vmem_limit_bytes=vmem_limit,
        ),
    )(*operands)

    return out[:B] if B_pad != B else out


def _reference_forward(x, params, *, dropout_mask=None, compute_dtype=jnp.bfloat16):
    """Pure-jnp reference using the same dtype casts as the kernel."""
    w1, b1, w2, b2 = params
    h = jnp.dot(x.astype(compute_dtype), w1.astype(compute_dtype),
                preferred_element_type=jnp.float32) + b1
    h = jnp.maximum(h, 0.0)
    if dropout_mask is not None:
        h = h * dropout_mask.astype(jnp.float32)
    logits = jnp.dot(h.astype(compute_dtype), w2.astype(compute_dtype),
                     preferred_element_type=jnp.float32) + b2
    return jax.nn.softmax(logits, axis=1)


def init_classifier_params(key, layer_size):
    """Synthetic init matching the module's __init__:
       xavier_normal_ weights, constant 0.1 biases (weights stored transposed)."""
    input_dim, h_dim, y_dim = layer_size
    k1, k2 = jax.random.split(key)
    std1 = math.sqrt(2.0 / (input_dim + h_dim))
    std2 = math.sqrt(2.0 / (h_dim + y_dim))
    w1 = std1 * jax.random.normal(k1, (input_dim, h_dim), dtype=jnp.float32)
    b1 = jnp.full((h_dim,), 0.1, dtype=jnp.float32)
    w2 = std2 * jax.random.normal(k2, (h_dim, y_dim), dtype=jnp.float32)
    b2 = jnp.full((y_dim,), 0.1, dtype=jnp.float32)
    return w1, b1, w2, b2


if __name__ == "__main__":
    # Small shapes consistent with the module: layer_size = [input_dim, h_dim, y_dim]
    layer_size = [32, 64, 8]
    batch = 8

    key = jax.random.PRNGKey(0)
    k_params, k_x, k_drop = jax.random.split(key, 3)
    params = init_classifier_params(k_params, layer_size)
    x = jax.random.normal(k_x, (batch, layer_size[0]), dtype=jnp.float32)

    # ---- eval mode (dropout = identity), inference semantics ----
    out = classifier_forward(x, params, training=False)
    out = jax.block_until_ready(out)
    assert out.shape == (batch, layer_size[2])
    row_sums = jnp.sum(out, axis=1)
    assert bool(jnp.all(jnp.abs(row_sums - 1.0) < 1e-4))
    ref = _reference_forward(x, params)
    assert bool(jnp.max(jnp.abs(out - ref)) < 1e-3)

    # ---- training mode: host-generated inverted-dropout mask (p=0.5) ----
    keep = jax.random.bernoulli(k_drop, 0.5, (batch, layer_size[1]))
    mask = (keep * 2.0).astype(jnp.bfloat16)
    out_tr = classifier_forward(x, params, training=True, dropout_mask=mask)
    out_tr = jax.block_until_ready(out_tr)
    assert out_tr.shape == (batch, layer_size[2])
    assert bool(jnp.all(jnp.abs(jnp.sum(out_tr, axis=1) - 1.0) < 1e-4))
    ref_tr = _reference_forward(x, params, dropout_mask=mask)
    assert bool(jnp.max(jnp.abs(out_tr - ref_tr)) < 1e-3)

    print("KERNEL_OK")
</pallas_src>

<mosaic_0001>
module attributes {stable_mosaic.version = 11 : i64} {
  func.func @kernel(%arg0: i32, %arg1: memref<8x32xbf16, #tpu.memory_space<vmem>>, %arg2: memref<32x64xbf16, #tpu.memory_space<vmem>>, %arg3: memref<1x64xf32, #tpu.memory_space<vmem>>, %arg4: memref<64x8xbf16, #tpu.memory_space<vmem>>, %arg5: memref<1x8xf32, #tpu.memory_space<vmem>>, %arg6: memref<8x8xf32, #tpu.memory_space<vmem>>) attributes {dimension_semantics = [#tpu.dimension_semantics<parallel>], iteration_bounds = array<i64: 1>, scalar_prefetch = 0 : i64, scratch_operands = 0 : i64, tpu.core_type = #tpu.core_type<tc>, window_params = [{transform_indices = @transform_0, window_bounds = array<i64: 8, 32>}, {pipeline_mode = #tpu.pipeline_mode<synchronous>, transform_indices = @transform_1, window_bounds = array<i64: 32, 64>}, {pipeline_mode = #tpu.pipeline_mode<synchronous>, transform_indices = @transform_2, window_bounds = array<i64: 1, 64>}, {pipeline_mode = #tpu.pipeline_mode<synchronous>, transform_indices = @transform_3, window_bounds = array<i64: 64, 8>}, {pipeline_mode = #tpu.pipeline_mode<synchronous>, transform_indices = @transform_4, window_bounds = array<i64: 1, 8>}, {transform_indices = @transform_5, window_bounds = array<i64: 8, 8>}]} {
    %c0 = arith.constant 0 : index
    %c0_0 = arith.constant 0 : index
    %0 = vector.load %arg1[%c0, %c0_0] : memref<8x32xbf16, #tpu.memory_space<vmem>>, vector<8x32xbf16>
    %c0_1 = arith.constant 0 : index
    %c0_2 = arith.constant 0 : index
    %1 = vector.load %arg3[%c0_1, %c0_2] : memref<1x64xf32, #tpu.memory_space<vmem>>, vector<1x64xf32>
    %c0_3 = arith.constant 0 : index
    %c0_4 = arith.constant 0 : index
    %2 = vector.load %arg5[%c0_3, %c0_4] : memref<1x8xf32, #tpu.memory_space<vmem>>, vector<1x8xf32>
    %c0_5 = arith.constant 0 : index
    %c0_6 = arith.constant 0 : index
    %3 = vector.load %arg2[%c0_5, %c0_6] : memref<32x64xbf16, #tpu.memory_space<vmem>>, vector<32x64xbf16>
    %cst = arith.constant dense<0.000000e+00> : vector<8x64xf32>
    %4 = tpu.matmul %0, %3, %cst {dimension_numbers = #tpu.dot_dimension_numbers<[1], [0], [0], [1], [0, 0, 1, 1], [], []>} : vector<8x32xbf16>, vector<32x64xbf16>, vector<8x64xf32> -> vector<8x64xf32>
    %5 = vector.broadcast %1 : vector<1x64xf32> to vector<8x64xf32>
    %6 = arith.addf %4, %5 : vector<8x64xf32>
    %cst_7 = arith.constant 0.000000e+00 : f32
    %7 = vector.broadcast %cst_7 : f32 to vector<8x64xf32>
    %8 = arith.maximumf %6, %7 : vector<8x64xf32>
    %9 = arith.truncf %8 : vector<8x64xf32> to vector<8x64xbf16>
    %c0_8 = arith.constant 0 : index
    %c0_9 = arith.constant 0 : index
    %10 = vector.load %arg4[%c0_8, %c0_9] : memref<64x8xbf16, #tpu.memory_space<vmem>>, vector<64x8xbf16>
    %cst_10 = arith.constant dense<0.000000e+00> : vector<8x8xf32>
    %11 = tpu.matmul %9, %10, %cst_10 {dimension_numbers = #tpu.dot_dimension_numbers<[1], [0], [0], [1], [0, 0, 1, 1], [], []>} : vector<8x64xbf16>, vector<64x8xbf16>, vector<8x8xf32> -> vector<8x8xf32>
    %12 = vector.broadcast %2 : vector<1x8xf32> to vector<8x8xf32>
    %13 = arith.addf %11, %12 : vector<8x8xf32>
    %cst_11 = arith.constant dense<0xFF800000> : vector<8xf32>
    %14 = vector.multi_reduction <maximumf>, %13, %cst_11 [1] : vector<8x8xf32> to vector<8xf32>
    %15 = vector.shape_cast %14 : vector<8xf32> to vector<8x1xf32>
    %16 = vector.broadcast %15 : vector<8x1xf32> to vector<8x8xf32>
    %17 = arith.subf %13, %16 : vector<8x8xf32>
    %18 = math.exp %17 : vector<8x8xf32>
    %cst_12 = arith.constant dense<0.000000e+00> : vector<8xf32>
    %19 = vector.multi_reduction <add>, %18, %cst_12 [1] : vector<8x8xf32> to vector<8xf32>
    %20 = vector.shape_cast %19 : vector<8xf32> to vector<8x1xf32>
    %21 = tpu.reciprocal %20 : vector<8x1xf32> -> vector<8x1xf32>
    %22 = vector.broadcast %21 : vector<8x1xf32> to vector<8x8xf32>
    %23 = arith.mulf %18, %22 : vector<8x8xf32>
    %c0_13 = arith.constant 0 : index
    %c0_14 = arith.constant 0 : index
    %24 = vector.load %arg6[%c0_13, %c0_14] : memref<8x8xf32, #tpu.memory_space<vmem>>, vector<8x8xf32>
    tpu.vector_store %arg6[%c0_13, %c0_14], %23 {strides = array<i32>} : memref<8x8xf32, #tpu.memory_space<vmem>>, vector<8x8xf32>,
    return
  }
  func.func @transform_0(%arg0: i32) -> (i32, i32) {
    %c0_i32 = arith.constant 0 : i32
    %c0_i32_0 = arith.constant 0 : i32
    return %arg0, %c0_i32 : i32, i32
  }
  func.func @transform_1(%arg0: i32) -> (i32, i32) {
    %c0_i32 = arith.constant 0 : i32
    %c0_i32_0 = arith.constant 0 : i32
    %c0_i32_1 = arith.constant 0 : i32
    return %c0_i32, %c0_i32_0 : i32, i32
  }
  func.func @transform_2(%arg0: i32) -> (i32, i32) {
    %c0_i32 = arith.constant 0 : i32
    %c0_i32_0 = arith.constant 0 : i32
    %c0_i32_1 = arith.constant 0 : i32
    return %c0_i32, %c0_i32_0 : i32, i32
  }
  func.func @transform_3(%arg0: i32) -> (i32, i32) {
    %c0_i32 = arith.constant 0 : i32
    %c0_i32_0 = arith.constant 0 : i32
    %c0_i32_1 = arith.constant 0 : i32
    return %c0_i32, %c0_i32_0 : i32, i32
  }
  func.func @transform_4(%arg0: i32) -> (i32, i32) {
    %c0_i32 = arith.constant 0 : i32
    %c0_i32_0 = arith.constant 0 : i32
    %c0_i32_1 = arith.constant 0 : i32
    return %c0_i32, %c0_i32_0 : i32, i32
  }
  func.func @transform_5(%arg0: i32) -> (i32, i32) {
    %c0_i32 = arith.constant 0 : i32
    %c0_i32_0 = arith.constant 0 : i32
    return %arg0, %c0_i32 : i32, i32
  }
}

</mosaic_0001>

<llo_original>
// kernel: tpu_custom_call.1
$region0: #{tpu_custom_call.1}
  #allocation0 [shape = 'u32[]', space=smem, size = 0x4, offset = 0x4, fixed_abs, tag = 'smem constant byte address 0x4 - core index']
  #allocation1 [shape = 'u32[144,128]{1,0:T(1,128)}', space=vmem, size = 0x12000, scoped, tag = 'internal scratch']
  %s0 = inlined_call_operand.vmem [shape: bf16[8,32], index: 0, kind: input, shape index: {}]
  %s1 = inlined_call_operand.vmem [shape: bf16[32,64], index: 1, kind: input, shape index: {}]
  %s2 = inlined_call_operand.vmem [shape: f32[1,64], index: 2, kind: input, shape index: {}]
  %s3 = inlined_call_operand.vmem [shape: bf16[64,8], index: 3, kind: input, shape index: {}]
  %s4 = inlined_call_operand.vmem [shape: f32[1,8], index: 4, kind: input, shape index: {}]
  %s5 = inlined_call_operand.hbm [shape: f32[8,8], index: 5, kind: output, shape index: {}]
  %s6 = sld [smem:[#allocation0]]
  $region30: #{tpu_custom_call.1} parent=0
    _
  %s8 = ssub.s32 1, %s6
  %s9 = scalar_select 0, %s8, %s6
  $region1: #{tpu_custom_call.1} parent=0
    #allocation2 [shape = 'u8[4096]{0}', space=vmem, size = 0x1000, scoped, tag = 'output window, operand 0, single buffered']
    #allocation3 [shape = 's32[1]{0}', space=sflag, size = 0x4, scoped, tag = 'scoped memory for tpu_custom_call.1']
    %10 = vsyncpa [#allocation3], 0
    // Predicated region
    $region2: #{tpu_custom_call.1} parent=1 // pred_check
      _
    $region3: #{tpu_custom_call.1} parent=1 // pred_check_branch
      %12 = sbr.rel (0) target = $region5
    $region4: #{tpu_custom_call.1} parent=1 // pred_region
      _
    $region5: #{tpu_custom_call.1} parent=1 // pred_fallthru
      _
    // Predicated region
    $region6: #{tpu_custom_call.1} parent=1 // pred_check
      _
    $region7: #{tpu_custom_call.1} parent=1 // pred_check_branch
      %14 = sbr.rel (0) target = $region9
    $region8: #{tpu_custom_call.1} parent=1 // pred_region
      _
    $region9: #{tpu_custom_call.1} parent=1 // pred_fallthru
      _
    // Predicated region
    $region10: #{tpu_custom_call.1} parent=1 // pred_check
      _
    $region11: #{tpu_custom_call.1} parent=1 // pred_check_branch
      %16 = sbr.rel (0) target = $region13
    $region12: #{tpu_custom_call.1} parent=1 // pred_region
      _
    $region13: #{tpu_custom_call.1} parent=1 // pred_fallthru
      _
    // Predicated region
    $region14: #{tpu_custom_call.1} parent=1 // pred_check
      _
    $region15: #{tpu_custom_call.1} parent=1 // pred_check_branch
      %18 = sbr.rel (0) target = $region17
    $region16: #{tpu_custom_call.1} parent=1 // pred_region
      _
    $region17: #{tpu_custom_call.1} parent=1 // pred_fallthru
      _
    // Predicated region
    $region18: #{tpu_custom_call.1} parent=1 // pred_check
      _
    $region19: #{tpu_custom_call.1} parent=1 // pred_check_branch
      %20 = sbr.rel (0) target = $region21
    $region20: #{tpu_custom_call.1} parent=1 // pred_region
      _
    $region21: #{tpu_custom_call.1} parent=1 // pred_fallthru
      _
    %v22 = vld [vmem:[%s0] sm:$0xf]
    %v23 = vld [vmem:[%s2] sm:$0x1]
    %v24 = vld [vmem:[%s4] sm:$0x1]
    %v25 = vld [vmem:[%s1] sm:$0xf]
    %v26 = vld [vmem:[%s1 + $0x4] sm:$0xf]
    %v27 = vld [vmem:[%s1 + $0x8] sm:$0xf]
    %v28 = vld [vmem:[%s1 + $0xc] sm:$0xf]
    %v30 = vlaneseq
    %v31 = vshrl.u32 %v30, 7
    %v32 = vsub.s32 0, %v31
    %v33 = vrot.slane %v23, %v32
    %v39 = vunpack.c.l.b16 %v25
    %v40 = vunpack.c.l.b16 %v26
    %v41 = vunpack.c.l.b16 %v27
    %v42 = vunpack.c.l.b16 %v28
    %v43 = vpack.c.b16 %v40, %v39
    %v44 = vpack.c.b16 %v42, %v41
    %vm47 = vcmask 261120
    %v49 = vsel %vm47, %v22, 0
    %51 = vmatprep.subr.bf16.mxu0 0
    %52 = vmatpush1.bf16.msra.mxu0 %v43
    %53 = vmatprep.subr.bf16.mxu0 0
    %54 = vmatpush1.bf16.msra.mxu0 %v44
    %55 = vmatprep.subr.bf16.mxu0 0
    %56 = vmatpush1.bf16.msra.mxu0 0
    %57 = vmatprep.subr.bf16.mxu0 0
    %58 = vmatpush1.bf16.msra.mxu0 0
    %59 = vmatprep.subr.bf16.mxu0 0
    %60 = vmatpush1.bf16.msra.mxu0 0
    %61 = vmatprep.subr.bf16.mxu0 0
    %62 = vmatpush1.bf16.msra.mxu0 0
    %63 = vmatprep.subr.bf16.mxu0 0
    %64 = vmatpush1.bf16.msra.mxu0 0
    %65 = vmatprep.subr.bf16.mxu0 0
    %66 = vmatpush1.bf16.msra.mxu0 0
    %67 = vmatprep.subr.bf16.mxu0 0
    %68 = vmatpush1.bf16.msra.mxu0 0
    %69 = vmatprep.subr.bf16.mxu0 0
    %70 = vmatpush1.bf16.msra.mxu0 0
    %71 = vmatprep.subr.bf16.mxu0 0
    %72 = vmatpush1.bf16.msra.mxu0 0
    %73 = vmatprep.subr.bf16.mxu0 0
    %74 = vmatpush1.bf16.msra.mxu0 0
    %75 = vmatprep.subr.bf16.mxu0 0
    %76 = vmatpush1.bf16.msra.mxu0 0
    %77 = vmatprep.subr.bf16.mxu0 0
    %78 = vmatpush1.bf16.msra.mxu0 0
    %79 = vmatprep.subr.bf16.mxu0 0
    %80 = vmatpush1.bf16.msra.mxu0 0
    %81 = vmatprep.subr.bf16.mxu0 0
    %82 = vmatpush1.bf16.msra.mxu0 0
    %83 = vmatprep.mubr.bf16.mxu0 0
    %84 = vmatmul.mubr.bf16.gmra.mrb[0].mxu0 %v49
    %v85 = vpop.f32.mrb[0].mxu0
    %v86 = vadd.f32 %v33, %v85
    %v87 = vpop.f32.mrb[0].mxu0
    %v88 = vpop.f32.mrb[0].mxu0
    %v89 = vpop.f32.mrb[0].mxu0
    %90 = vdwg.mxu0
    %v91 = vmax.f32 %v86, 0.0
    %v92 = vpack.c.bf16 %v91, %v91
    %v93 = vld [vmem:[%s3] sm:$0xf]
    %v94 = vld [vmem:[%s3 + $0x4] sm:$0xf]
    %v95 = vld [vmem:[%s3 + $0x8] sm:$0xf]
    %v96 = vld [vmem:[%s3 + $0xc] sm:$0xf]
    %v97 = vld [vmem:[%s3 + $0x10] sm:$0xf]
    %v98 = vld [vmem:[%s3 + $0x14] sm:$0xf]
    %v99 = vld [vmem:[%s3 + $0x18] sm:$0xf]
    %v100 = vld [vmem:[%s3 + $0x1c] sm:$0xf]
    %v102 = vlaneseq
    %v103 = vshrl.u32 %v102, 7
    %v104 = vsub.s32 0, %v103
    %v105 = vrot.slane %v24, %v104
    %v115 = vunpack.c.l.b16 %v93
    %v116 = vunpack.c.l.b16 %v94
    %v117 = vunpack.c.l.b16 %v95
    %v118 = vunpack.c.l.b16 %v96
    %v119 = vunpack.c.l.b16 %v97
    %v120 = vunpack.c.l.b16 %v98
    %v121 = vunpack.c.l.b16 %v99
    %v122 = vunpack.c.l.b16 %v100
    %v123 = vpack.c.b16 %v116, %v115
    %v124 = vpack.c.b16 %v118, %v117
    %v125 = vpack.c.b16 %v120, %v119
    %v126 = vpack.c.b16 %v122, %v121
    %vm131 = vcmask 523264
    %v133 = vsel %vm131, %v92, 0
    %135 = vmatprep.subr.bf16.mxu0 0
    %136 = vmatpush1.bf16.msra.mxu0 %v123
    %137 = vmatprep.subr.bf16.mxu0 0
    %138 = vmatpush1.bf16.msra.mxu0 %v124
    %139 = vmatprep.subr.bf16.mxu0 0
    %140 = vmatpush1.bf16.msra.mxu0 %v125
    %141 = vmatprep.subr.bf16.mxu0 0
    %142 = vmatpush1.bf16.msra.mxu0 %v126
    %143 = vmatprep.subr.bf16.mxu0 0
    %144 = vmatpush1.bf16.msra.mxu0 0
    %145 = vmatprep.subr.bf16.mxu0 0
    %146 = vmatpush1.bf16.msra.mxu0 0
    %147 = vmatprep.subr.bf16.mxu0 0
    %148 = vmatpush1.bf16.msra.mxu0 0
    %149 = vmatprep.subr.bf16.mxu0 0
    %150 = vmatpush1.bf16.msra.mxu0 0
    %151 = vmatprep.subr.bf16.mxu0 0
    %152 = vmatpush1.bf16.msra.mxu0 0
    %153 = vmatprep.subr.bf16.mxu0 0
    %154 = vmatpush1.bf16.msra.mxu0 0
    %155 = vmatprep.subr.bf16.mxu0 0
    %156 = vmatpush1.bf16.msra.mxu0 0
    %157 = vmatprep.subr.bf16.mxu0 0
    %158 = vmatpush1.bf16.msra.mxu0 0
    %159 = vmatprep.subr.bf16.mxu0 0
    %160 = vmatpush1.bf16.msra.mxu0 0
    %161 = vmatprep.subr.bf16.mxu0 0
    %162 = vmatpush1.bf16.msra.mxu0 0
    %163 = vmatprep.subr.bf16.mxu0 0
    %164 = vmatpush1.bf16.msra.mxu0 0
    %165 = vmatprep.subr.bf16.mxu0 0
    %166 = vmatpush1.bf16.msra.mxu0 0
    %167 = vmatprep.mubr.bf16.mxu0 0
    %168 = vmatmul.mubr.bf16.gmra.mrb[0].mxu0 %v133
    %v169 = vpop.f32.mrb[0].mxu0
    %v170 = vadd.f32 %v105, %v169
    %v171 = vpop.f32.mrb[0].mxu0
    %v172 = vpop.f32.mrb[0].mxu0
    %v173 = vpop.f32.mrb[0].mxu0
    %174 = vdwg.mxu0
    %vm175 = vcmask 64512
    %v176 = vsel %vm175, %v170, -inf
    %177 = vmax.xlane.f32.xlu0 %v176
    %v178 = vpop.xlane.xlu0 %177
    %v179 = vsub.f32 %v170, %v178
    %v180 = vmul.f32 %v179, 1.442695
    %v181 = vpow.pop %v180
    %v182 = vsel %vm175, %v181, 0.0
    %183 = vadd.xlane.f32.xlu0 %v182
    %v184 = vpop.xlane.xlu0 %183
    %v185 = vrcp.pop %v184
    %v186 = vmul.f32 %v181, %v185
    %187 = vst.msk [vmem:[#allocation2] sm:$0xff] %vm175, %v186
    // Predicated region
    $region22: #{tpu_custom_call.1} parent=1 // pred_check
      _
    $region23: #{tpu_custom_call.1} parent=1 // pred_check_branch
      %189 = sbr.rel (0) target = $region25
    $region24: #{tpu_custom_call.1} parent=1 // pred_region
      %s191 = ssub.s32 128, 128
      %192 = vsyncadd [#allocation3], %s191
      %s194 = sshll.u32 [#allocation2], 4
      %s195 = int_to_ptr.vmem [resolvable:$true] %s194
      %197 = dma.vmem_to_hbm [thread:$0]  %s195, 128, %s5, [#allocation3]
    $region25: #{tpu_custom_call.1} parent=1 // pred_fallthru
      _
    // Predicated region
    $region26: #{tpu_custom_call.1} parent=1 // pred_check
      _
    $region27: #{tpu_custom_call.1} parent=1 // pred_check_branch
      %199 = sbr.rel (0) target = $region29
    $region28: #{tpu_custom_call.1} parent=1 // pred_region
      %200 = dma.done [#allocation3], 128
    $region29: #{tpu_custom_call.1} parent=1 // pred_fallthru
      _
    %201 = vsyncpa [#allocation3], 1

</llo_original>
